<compile_context>
chip_gen: v6e
topology: v6e:2x2x1
jax: 0.10.0
libtpu: 0.0.40
codegen_flags: <defaults>
</compile_context>

<pallas_src>
import functools

import jax
import jax.numpy as jnp
from jax import lax
from jax.experimental import pallas as pl
from jax.experimental.pallas import tpu as pltpu

BN_EPS = 1e-5


def _round_up(x, m):
    return (x + m - 1) // m * m


def _conv_tile(x_ref, w_ref, *, H, Wp, CinP):
    """3x3 'same' conv of one image as ONE MXU matmul with contraction depth 9*CinP.

    x_ref: (1, CinP, Lp)   zero-padded NCHW image, padded rows flattened onto the lane axis.
    w_ref: (Cout, 9*CinP)  filter, K index = (dy*3 + dx)*CinP + ci.
    Returns (Cout, M) f32 conv values on the (H, Wp) output grid, M = H * Wp.
    """
    M = H * Wp
    Lp = x_ref.shape[-1]
    x2d = x_ref[0, :, :]                                   # (CinP, Lp), lane-dense
    pieces = []
    for dy in range(3):
        for dx in range(3):
            off = dy * Wp + dx                             # static flat-row offset of this tap
            # Lane-rotate so the tap window starts at lane 0, then take an aligned [:, :M]
            # slice.  Wrapped tail lanes land at index >= Lp - off > M, so they never enter.
            shifted = pltpu.roll(x2d, (Lp - off) % Lp, axis=1) if off else x2d
            pieces.append(shifted[:, :M])                  # (CinP, M)
    lhs_t = jnp.concatenate(pieces, axis=0)                # (9*CinP, M) im2col^T, VMEM only
    return jnp.dot(w_ref[...], lhs_t, preferred_element_type=jnp.float32)


def conv_stats_kernel(x_ref, w_ref, sum_ref, sq_ref, *, H, W, Wp, CinP):
    """Pass 1: per-image, per-channel one-pass (sum, sum of squares) of the conv output."""
    M = H * Wp
    conv = _conv_tile(x_ref, w_ref, H=H, Wp=Wp, CinP=CinP)          # (Cout, M)
    # Valid-column mask built in-kernel: columns x >= W are flattened-row padding.
    col = lax.broadcasted_iota(jnp.int32, (1, M), 1) % Wp
    mask = (col < W).astype(jnp.float32)                            # (1, M)
    masked = conv * mask
    sum_ref[0, :, :] = jnp.sum(masked, axis=1, keepdims=True)       # (Cout, 1)
    sq_ref[0, :, :] = jnp.sum(masked * conv, axis=1, keepdims=True)  # (Cout, 1)


def conv_bn_relu_kernel(x_ref, w_ref, scale_ref, shift_ref, out_ref, *, H, Wp, CinP):
    """Pass 2: recompute the cheap conv, apply folded BN scale/shift + ReLU, store lane-dense."""
    conv = _conv_tile(x_ref, w_ref, H=H, Wp=Wp, CinP=CinP)          # (Cout, M)
    y = conv * scale_ref[...] + shift_ref[...]                       # (Cout, 1) bcast over lanes
    out_ref[0, :, :] = jnp.maximum(y, 0.0).astype(out_ref.dtype)


@jax.jit
def unit_forward(x, conv_w, conv_b, bn_gamma, bn_beta):
    """x: NCHW float32.  conv_w: [Cout, Cin, 3, 3] (PyTorch OIHW layout).

    conv_b is accepted for interface parity, but a bias added before training-mode BatchNorm
    is exactly cancelled by the batch-mean subtraction, so it never enters the kernels.
    """
    del conv_b
    n, cin, h, w = x.shape
    cout, _, kh, kw = conv_w.shape
    assert (kh, kw) == (3, 3)

    hp, wp = h + 2, w + 2
    m = h * wp                                   # flattened (H, Wp) output positions per image
    cin_p = _round_up(cin, 8)                    # sublane-tile-aligned input channel count
    lp = _round_up(hp * wp + 2, 128)             # lane-dense flattened padded-row length

    # NCHW 'same' zero padding, padded rows flattened onto the lane axis:
    # x_flat[i, ci, y*wp + x] = x_pad[i, ci, y, x]; zero tail covers the last tap window.
    x_pad = jnp.pad(x, ((0, 0), (0, 0), (1, 1), (1, 1)))
    x_flat = jnp.pad(x_pad.reshape(n, cin, hp * wp),
                     ((0, 0), (0, cin_p - cin), (0, lp - hp * wp))).astype(jnp.float32)

    # Filter as a single (Cout, 9*cin_p) matrix; K index = (dy*3 + dx)*cin_p + ci.
    w2 = jnp.transpose(conv_w, (0, 2, 3, 1))                        # (cout, 3, 3, cin)
    w2 = jnp.pad(w2, ((0, 0), (0, 0), (0, 0), (0, cin_p - cin)))
    w2 = w2.reshape(cout, 9 * cin_p).astype(jnp.float32)

    x_spec = pl.BlockSpec((1, cin_p, lp), lambda i: (i, 0, 0))
    w_spec = pl.BlockSpec((cout, 9 * cin_p), lambda i: (0, 0))
    cparams = pltpu.CompilerParams(
        dimension_semantics=("parallel",),
        vmem_limit_bytes=32 * 1024 * 1024,       # safe on v5e/v6e (128 MiB) and v7x (64 MiB)
    )

    # Pass 1: statistics only — the conv values never touch HBM.
    s1p, s2p = pl.pallas_call(
        functools.partial(conv_stats_kernel, H=h, W=w, Wp=wp, CinP=cin_p),
        out_shape=(jax.ShapeDtypeStruct((n, cout, 1), jnp.float32),
                   jax.ShapeDtypeStruct((n, cout, 1), jnp.float32)),
        grid_spec=pltpu.PrefetchScalarGridSpec(
            num_scalar_prefetch=0,
            grid=(n,),
            in_specs=[x_spec, w_spec],
            out_specs=[pl.BlockSpec((1, cout, 1), lambda i: (i, 0, 0)),
                       pl.BlockSpec((1, cout, 1), lambda i: (i, 0, 0))],
        ),
        compiler_params=cparams,
    )(x_flat, w2)

    # Tiny glue: global batch statistics and folded per-channel scale / shift.
    # (One-pass sum/sumsq in f32; activations are O(1) at these scales so cancellation is benign.)
    cnt = float(n * h * w)
    s1 = jnp.sum(s1p[:, :, 0], axis=0)
    s2 = jnp.sum(s2p[:, :, 0], axis=0)
    mean = s1 / cnt
    var = jnp.maximum(s2 / cnt - mean * mean, 0.0)                  # biased (training-mode) var
    scale = bn_gamma.astype(jnp.float32) * lax.rsqrt(var + BN_EPS)
    shift = bn_beta.astype(jnp.float32) - mean * scale

    # Pass 2: recompute the (cheap, K=9*cin_p) conv fused with BN scale/shift + ReLU.  The
    # output is stored lane-dense as (n, cout, h*wp); the NCHW view is a reshape + column slice.
    out_slab = pl.pallas_call(
        functools.partial(conv_bn_relu_kernel, H=h, Wp=wp, CinP=cin_p),
        out_shape=jax.ShapeDtypeStruct((n, cout, m), jnp.float32),
        grid_spec=pltpu.PrefetchScalarGridSpec(
            num_scalar_prefetch=0,
            grid=(n,),
            in_specs=[x_spec, w_spec,
                      pl.BlockSpec((cout, 1), lambda i: (0, 0)),
                      pl.BlockSpec((cout, 1), lambda i: (0, 0))],
            out_specs=pl.BlockSpec((1, cout, m), lambda i: (i, 0, 0)),
        ),
        compiler_params=cparams,
    )(x_flat, w2, scale.reshape(cout, 1), shift.reshape(cout, 1))

    # Drop the Wp - W padded columns; the slab is already NCHW-ordered.
    return out_slab.reshape(n, cout, h, wp)[:, :, :, :w]


def unit_reference(x, conv_w, conv_b, bn_gamma, bn_beta):
    """Pure-JAX reference (conv + train-mode BN + ReLU) for correctness checking."""
    conv = lax.conv_general_dilated(
        x, conv_w, window_strides=(1, 1), padding=((1, 1), (1, 1)),
        dimension_numbers=("NCHW", "OIHW", "NCHW"))
    conv = conv + conv_b.reshape(1, -1, 1, 1)
    mean = jnp.mean(conv, axis=(0, 2, 3), keepdims=True)
    var = jnp.mean((conv - mean) ** 2, axis=(0, 2, 3), keepdims=True)
    out = (conv - mean) * lax.rsqrt(var + BN_EPS)
    out = out * bn_gamma.reshape(1, -1, 1, 1) + bn_beta.reshape(1, -1, 1, 1)
    return jnp.maximum(out, 0.0)


if __name__ == "__main__":
    key = jax.random.PRNGKey(0)
    k_x, k_w, k_b, k_g, k_be = jax.random.split(key, 5)

    N, Cin, H, W = 2, 4, 16, 16
    Cout, KH, KW = 8, 3, 3

    x = jax.random.normal(k_x, (N, Cin, H, W), dtype=jnp.float32)
    conv_w = jax.random.normal(k_w, (Cout, Cin, KH, KW), dtype=jnp.float32) * 0.1
    conv_b = jax.random.normal(k_b, (Cout,), dtype=jnp.float32) * 0.1
    bn_gamma = 1.0 + 0.1 * jax.random.normal(k_g, (Cout,), dtype=jnp.float32)
    bn_beta = 0.1 * jax.random.normal(k_be, (Cout,), dtype=jnp.float32)

    out = unit_forward(x, conv_w, conv_b, bn_gamma, bn_beta)
    out = jax.block_until_ready(out)

    ref = unit_reference(x, conv_w, conv_b, bn_gamma, bn_beta)
    assert out.shape == (N, Cout, H, W)
    assert jnp.allclose(out, ref, atol=1e-4, rtol=1e-4), "mismatch vs reference"

    print("KERNEL_OK")
</pallas_src>

<mosaic_0001>
module attributes {stable_mosaic.version = 11 : i64} {
  func.func @conv_bn_relu_kernel(%arg0: i32, %arg1: memref<1x8x384xf32, #tpu.memory_space<vmem>>, %arg2: memref<8x72xf32, #tpu.memory_space<vmem>>, %arg3: memref<8x1xf32, #tpu.memory_space<vmem>>, %arg4: memref<8x1xf32, #tpu.memory_space<vmem>>, %arg5: memref<1x8x288xf32, #tpu.memory_space<vmem>>) attributes {dimension_semantics = [#tpu.dimension_semantics<parallel>], iteration_bounds = array<i64: 2>, scalar_prefetch = 0 : i64, scratch_operands = 0 : i64, tpu.core_type = #tpu.core_type<tc>, window_params = [{transform_indices = @transform_0, window_bounds = array<i64: 1, 8, 384>}, {pipeline_mode = #tpu.pipeline_mode<synchronous>, transform_indices = @transform_1, window_bounds = array<i64: 8, 72>}, {pipeline_mode = #tpu.pipeline_mode<synchronous>, transform_indices = @transform_2, window_bounds = array<i64: 8, 1>}, {pipeline_mode = #tpu.pipeline_mode<synchronous>, transform_indices = @transform_3, window_bounds = array<i64: 8, 1>}, {transform_indices = @transform_4, window_bounds = array<i64: 1, 8, 288>}]} {
    %c0 = arith.constant 0 : index
    %c0_0 = arith.constant 0 : index
    %c0_1 = arith.constant 0 : index
    %0 = vector.load %arg1[%c0, %c0_0, %c0_1] : memref<1x8x384xf32, #tpu.memory_space<vmem>>, vector<1x8x384xf32>
    %1 = vector.shape_cast %0 : vector<1x8x384xf32> to vector<8x384xf32>
    %2 = vector.extract_strided_slice %1 {offsets = [0, 0], sizes = [8, 288], strides = [1, 1]} : vector<8x384xf32> to vector<8x288xf32>
    %c383_i32 = arith.constant 383 : i32
    %3 = tpu.dynamic_rotate %1 by %c383_i32 dim 1 : vector<8x384xf32>, i32 -> vector<8x384xf32>
    %4 = vector.extract_strided_slice %3 {offsets = [0, 0], sizes = [8, 288], strides = [1, 1]} : vector<8x384xf32> to vector<8x288xf32>
    %c382_i32 = arith.constant 382 : i32
    %5 = tpu.dynamic_rotate %1 by %c382_i32 dim 1 : vector<8x384xf32>, i32 -> vector<8x384xf32>
    %6 = vector.extract_strided_slice %5 {offsets = [0, 0], sizes = [8, 288], strides = [1, 1]} : vector<8x384xf32> to vector<8x288xf32>
    %c366_i32 = arith.constant 366 : i32
    %7 = tpu.dynamic_rotate %1 by %c366_i32 dim 1 : vector<8x384xf32>, i32 -> vector<8x384xf32>
    %8 = vector.extract_strided_slice %7 {offsets = [0, 0], sizes = [8, 288], strides = [1, 1]} : vector<8x384xf32> to vector<8x288xf32>
    %c365_i32 = arith.constant 365 : i32
    %9 = tpu.dynamic_rotate %1 by %c365_i32 dim 1 : vector<8x384xf32>, i32 -> vector<8x384xf32>
    %10 = vector.extract_strided_slice %9 {offsets = [0, 0], sizes = [8, 288], strides = [1, 1]} : vector<8x384xf32> to vector<8x288xf32>
    %c364_i32 = arith.constant 364 : i32
    %11 = tpu.dynamic_rotate %1 by %c364_i32 dim 1 : vector<8x384xf32>, i32 -> vector<8x384xf32>
    %12 = vector.extract_strided_slice %11 {offsets = [0, 0], sizes = [8, 288], strides = [1, 1]} : vector<8x384xf32> to vector<8x288xf32>
    %c348_i32 = arith.constant 348 : i32
    %13 = tpu.dynamic_rotate %1 by %c348_i32 dim 1 : vector<8x384xf32>, i32 -> vector<8x384xf32>
    %14 = vector.extract_strided_slice %13 {offsets = [0, 0], sizes = [8, 288], strides = [1, 1]} : vector<8x384xf32> to vector<8x288xf32>
    %c347_i32 = arith.constant 347 : i32
    %15 = tpu.dynamic_rotate %1 by %c347_i32 dim 1 : vector<8x384xf32>, i32 -> vector<8x384xf32>
    %16 = vector.extract_strided_slice %15 {offsets = [0, 0], sizes = [8, 288], strides = [1, 1]} : vector<8x384xf32> to vector<8x288xf32>
    %c346_i32 = arith.constant 346 : i32
    %17 = tpu.dynamic_rotate %1 by %c346_i32 dim 1 : vector<8x384xf32>, i32 -> vector<8x384xf32>
    %18 = vector.extract_strided_slice %17 {offsets = [0, 0], sizes = [8, 288], strides = [1, 1]} : vector<8x384xf32> to vector<8x288xf32>
    %19 = tpu.concatenate %2, %4, %6, %8, %10, %12, %14, %16, %18 in 0 : vector<8x288xf32>, vector<8x288xf32>, vector<8x288xf32>, vector<8x288xf32>, vector<8x288xf32>, vector<8x288xf32>, vector<8x288xf32>, vector<8x288xf32>, vector<8x288xf32> -> vector<72x288xf32>
    %c0_2 = arith.constant 0 : index
    %c0_3 = arith.constant 0 : index
    %20 = vector.load %arg2[%c0_2, %c0_3] : memref<8x72xf32, #tpu.memory_space<vmem>>, vector<8x72xf32>
    %cst = arith.constant dense<0.000000e+00> : vector<8x288xf32>
    %21 = tpu.matmul %20, %19, %cst {dimension_numbers = #tpu.dot_dimension_numbers<[1], [0], [0], [1], [0, 0, 1, 1], [], []>} : vector<8x72xf32>, vector<72x288xf32>, vector<8x288xf32> -> vector<8x288xf32>
    %c0_4 = arith.constant 0 : index
    %c0_5 = arith.constant 0 : index
    %22 = vector.load %arg3[%c0_4, %c0_5] : memref<8x1xf32, #tpu.memory_space<vmem>>, vector<8x1xf32>
    %23 = vector.broadcast %22 : vector<8x1xf32> to vector<8x288xf32>
    %24 = arith.mulf %21, %23 : vector<8x288xf32>
    %c0_6 = arith.constant 0 : index
    %c0_7 = arith.constant 0 : index
    %25 = vector.load %arg4[%c0_6, %c0_7] : memref<8x1xf32, #tpu.memory_space<vmem>>, vector<8x1xf32>
    %26 = vector.broadcast %25 : vector<8x1xf32> to vector<8x288xf32>
    %27 = arith.addf %24, %26 : vector<8x288xf32>
    %cst_8 = arith.constant 0.000000e+00 : f32
    %28 = vector.broadcast %cst_8 : f32 to vector<8x288xf32>
    %29 = arith.maximumf %27, %28 : vector<8x288xf32>
    %c0_9 = arith.constant 0 : index
    %c0_10 = arith.constant 0 : index
    %c0_11 = arith.constant 0 : index
    %30 = vector.load %arg5[%c0_9, %c0_10, %c0_11] : memref<1x8x288xf32, #tpu.memory_space<vmem>>, vector<1x8x288xf32>
    %31 = vector.shape_cast %30 : vector<1x8x288xf32> to vector<8x288xf32>
    %32 = vector.shape_cast %29 : vector<8x288xf32> to vector<1x8x288xf32>
    tpu.vector_store %arg5[%c0_9, %c0_10, %c0_11], %32 {strides = array<i32>} : memref<1x8x288xf32, #tpu.memory_space<vmem>>, vector<1x8x288xf32>,
    return
  }
  func.func @transform_0(%arg0: i32) -> (i32, i32, i32) {
    %c0_i32 = arith.constant 0 : i32
    %c0_i32_0 = arith.constant 0 : i32
    %c0_i32_1 = arith.constant 0 : i32
    return %arg0, %c0_i32, %c0_i32_0 : i32, i32, i32
  }
  func.func @transform_1(%arg0: i32) -> (i32, i32) {
    %c0_i32 = arith.constant 0 : i32
    %c0_i32_0 = arith.constant 0 : i32
    %c0_i32_1 = arith.constant 0 : i32
    return %c0_i32, %c0_i32_0 : i32, i32
  }
  func.func @transform_2(%arg0: i32) -> (i32, i32) {
    %c0_i32 = arith.constant 0 : i32
    %c0_i32_0 = arith.constant 0 : i32
    %c0_i32_1 = arith.constant 0 : i32
    return %c0_i32, %c0_i32_0 : i32, i32
  }
  func.func @transform_3(%arg0: i32) -> (i32, i32) {
    %c0_i32 = arith.constant 0 : i32
    %c0_i32_0 = arith.constant 0 : i32
    %c0_i32_1 = arith.constant 0 : i32
    return %c0_i32, %c0_i32_0 : i32, i32
  }
  func.func @transform_4(%arg0: i32) -> (i32, i32, i32) {
    %c0_i32 = arith.constant 0 : i32
    %c0_i32_0 = arith.constant 0 : i32
    %c0_i32_1 = arith.constant 0 : i32
    return %arg0, %c0_i32, %c0_i32_0 : i32, i32, i32
  }
}

module attributes {stable_mosaic.version = 11 : i64} {
  func.func @conv_stats_kernel(%arg0: i32, %arg1: memref<1x8x384xf32, #tpu.memory_space<vmem>>, %arg2: memref<8x72xf32, #tpu.memory_space<vmem>>, %arg3: memref<1x8x1xf32, #tpu.memory_space<vmem>>, %arg4: memref<1x8x1xf32, #tpu.memory_space<vmem>>) attributes {dimension_semantics = [#tpu.dimension_semantics<parallel>], iteration_bounds = array<i64: 2>, scalar_prefetch = 0 : i64, scratch_operands = 0 : i64, tpu.core_type = #tpu.core_type<tc>, window_params = [{transform_indices = @transform_0, window_bounds = array<i64: 1, 8, 384>}, {pipeline_mode = #tpu.pipeline_mode<synchronous>, transform_indices = @transform_1, window_bounds = array<i64: 8, 72>}, {transform_indices = @transform_2, window_bounds = array<i64: 1, 8, 1>}, {transform_indices = @transform_3, window_bounds = array<i64: 1, 8, 1>}]} {
    %c0 = arith.constant 0 : index
    %c0_0 = arith.constant 0 : index
    %c0_1 = arith.constant 0 : index
    %0 = vector.load %arg1[%c0, %c0_0, %c0_1] : memref<1x8x384xf32, #tpu.memory_space<vmem>>, vector<1x8x384xf32>
    %1 = vector.shape_cast %0 : vector<1x8x384xf32> to vector<8x384xf32>
    %2 = vector.extract_strided_slice %1 {offsets = [0, 0], sizes = [8, 288], strides = [1, 1]} : vector<8x384xf32> to vector<8x288xf32>
    %c383_i32 = arith.constant 383 : i32
    %3 = tpu.dynamic_rotate %1 by %c383_i32 dim 1 : vector<8x384xf32>, i32 -> vector<8x384xf32>
    %4 = vector.extract_strided_slice %3 {offsets = [0, 0], sizes = [8, 288], strides = [1, 1]} : vector<8x384xf32> to vector<8x288xf32>
    %c382_i32 = arith.constant 382 : i32
    %5 = tpu.dynamic_rotate %1 by %c382_i32 dim 1 : vector<8x384xf32>, i32 -> vector<8x384xf32>
    %6 = vector.extract_strided_slice %5 {offsets = [0, 0], sizes = [8, 288], strides = [1, 1]} : vector<8x384xf32> to vector<8x288xf32>
    %c366_i32 = arith.constant 366 : i32
    %7 = tpu.dynamic_rotate %1 by %c366_i32 dim 1 : vector<8x384xf32>, i32 -> vector<8x384xf32>
    %8 = vector.extract_strided_slice %7 {offsets = [0, 0], sizes = [8, 288], strides = [1, 1]} : vector<8x384xf32> to vector<8x288xf32>
    %c365_i32 = arith.constant 365 : i32
    %9 = tpu.dynamic_rotate %1 by %c365_i32 dim 1 : vector<8x384xf32>, i32 -> vector<8x384xf32>
    %10 = vector.extract_strided_slice %9 {offsets = [0, 0], sizes = [8, 288], strides = [1, 1]} : vector<8x384xf32> to vector<8x288xf32>
    %c364_i32 = arith.constant 364 : i32
    %11 = tpu.dynamic_rotate %1 by %c364_i32 dim 1 : vector<8x384xf32>, i32 -> vector<8x384xf32>
    %12 = vector.extract_strided_slice %11 {offsets = [0, 0], sizes = [8, 288], strides = [1, 1]} : vector<8x384xf32> to vector<8x288xf32>
    %c348_i32 = arith.constant 348 : i32
    %13 = tpu.dynamic_rotate %1 by %c348_i32 dim 1 : vector<8x384xf32>, i32 -> vector<8x384xf32>
    %14 = vector.extract_strided_slice %13 {offsets = [0, 0], sizes = [8, 288], strides = [1, 1]} : vector<8x384xf32> to vector<8x288xf32>
    %c347_i32 = arith.constant 347 : i32
    %15 = tpu.dynamic_rotate %1 by %c347_i32 dim 1 : vector<8x384xf32>, i32 -> vector<8x384xf32>
    %16 = vector.extract_strided_slice %15 {offsets = [0, 0], sizes = [8, 288], strides = [1, 1]} : vector<8x384xf32> to vector<8x288xf32>
    %c346_i32 = arith.constant 346 : i32
    %17 = tpu.dynamic_rotate %1 by %c346_i32 dim 1 : vector<8x384xf32>, i32 -> vector<8x384xf32>
    %18 = vector.extract_strided_slice %17 {offsets = [0, 0], sizes = [8, 288], strides = [1, 1]} : vector<8x384xf32> to vector<8x288xf32>
    %19 = tpu.concatenate %2, %4, %6, %8, %10, %12, %14, %16, %18 in 0 : vector<8x288xf32>, vector<8x288xf32>, vector<8x288xf32>, vector<8x288xf32>, vector<8x288xf32>, vector<8x288xf32>, vector<8x288xf32>, vector<8x288xf32>, vector<8x288xf32> -> vector<72x288xf32>
    %c0_2 = arith.constant 0 : index
    %c0_3 = arith.constant 0 : index
    %20 = vector.load %arg2[%c0_2, %c0_3] : memref<8x72xf32, #tpu.memory_space<vmem>>, vector<8x72xf32>
    %cst = arith.constant dense<0.000000e+00> : vector<8x288xf32>
    %21 = tpu.matmul %20, %19, %cst {dimension_numbers = #tpu.dot_dimension_numbers<[1], [0], [0], [1], [0, 0, 1, 1], [], []>} : vector<8x72xf32>, vector<72x288xf32>, vector<8x288xf32> -> vector<8x288xf32>
    %22 = tpu.iota {dimensions = array<i32: 1>} : vector<1x288xi32>
    %c18_i32 = arith.constant 18 : i32
    %c0_i32 = arith.constant 0 : i32
    %23 = arith.cmpi eq, %c18_i32, %c0_i32 : i32
    %c1_i32 = arith.constant 1 : i32
    %24 = arith.select %23, %c1_i32, %c18_i32 : i32
    %25 = vector.broadcast %24 : i32 to vector<1x288xi32>
    %26 = arith.remsi %22, %25 : vector<1x288xi32>
    %c0_i32_4 = arith.constant 0 : i32
    %27 = vector.broadcast %c0_i32_4 : i32 to vector<1x288xi32>
    %28 = arith.cmpi ne, %26, %27 : vector<1x288xi32>
    %c0_i32_5 = arith.constant 0 : i32
    %29 = vector.broadcast %c0_i32_5 : i32 to vector<1x288xi32>
    %30 = arith.cmpi slt, %26, %29 : vector<1x288xi32>
    %c0_i32_6 = arith.constant 0 : i32
    %31 = arith.cmpi slt, %24, %c0_i32_6 : i32
    %32 = vector.broadcast %31 : i1 to vector<1x288xi1>
    %33 = vector.broadcast %32 : vector<1x288xi1> to vector<1x288xi1>
    %34 = arith.xori %30, %33 : vector<1x288xi1>
    %35 = arith.andi %34, %28 : vector<1x288xi1>
    %36 = vector.broadcast %24 : i32 to vector<1x288xi32>
    %37 = arith.addi %26, %36 : vector<1x288xi32>
    %38 = arith.select %35, %37, %26 : vector<1x288xi1>, vector<1x288xi32>
    %c16_i32 = arith.constant 16 : i32
    %39 = vector.broadcast %c16_i32 : i32 to vector<1x288xi32>
    %40 = arith.cmpi slt, %38, %39 : vector<1x288xi32>
    %41 = arith.extui %40 : vector<1x288xi1> to vector<1x288xi32>
    %42 = arith.sitofp %41 : vector<1x288xi32> to vector<1x288xf32>
    %43 = vector.broadcast %42 : vector<1x288xf32> to vector<8x288xf32>
    %44 = arith.mulf %21, %43 : vector<8x288xf32>
    %cst_7 = arith.constant dense<0.000000e+00> : vector<8xf32>
    %45 = vector.multi_reduction <add>, %44, %cst_7 [1] : vector<8x288xf32> to vector<8xf32>
    %46 = vector.shape_cast %45 : vector<8xf32> to vector<8x1xf32>
    %c0_8 = arith.constant 0 : index
    %c0_9 = arith.constant 0 : index
    %c0_10 = arith.constant 0 : index
    %47 = vector.load %arg3[%c0_8, %c0_9, %c0_10] : memref<1x8x1xf32, #tpu.memory_space<vmem>>, vector<1x8x1xf32>
    %48 = vector.shape_cast %47 : vector<1x8x1xf32> to vector<8x1xf32>
    %49 = vector.shape_cast %46 : vector<8x1xf32> to vector<1x8x1xf32>
    tpu.vector_store %arg3[%c0_8, %c0_9, %c0_10], %49 {strides = array<i32>} : memref<1x8x1xf32, #tpu.memory_space<vmem>>, vector<1x8x1xf32>,
    %50 = arith.mulf %44, %21 : vector<8x288xf32>
    %cst_11 = arith.constant dense<0.000000e+00> : vector<8xf32>
    %51 = vector.multi_reduction <add>, %50, %cst_11 [1] : vector<8x288xf32> to vector<8xf32>
    %52 = vector.shape_cast %51 : vector<8xf32> to vector<8x1xf32>
    %c0_12 = arith.constant 0 : index
    %c0_13 = arith.constant 0 : index
    %c0_14 = arith.constant 0 : index
    %53 = vector.load %arg4[%c0_12, %c0_13, %c0_14] : memref<1x8x1xf32, #tpu.memory_space<vmem>>, vector<1x8x1xf32>
    %54 = vector.shape_cast %53 : vector<1x8x1xf32> to vector<8x1xf32>
    %55 = vector.shape_cast %52 : vector<8x1xf32> to vector<1x8x1xf32>
    tpu.vector_store %arg4[%c0_12, %c0_13, %c0_14], %55 {strides = array<i32>} : memref<1x8x1xf32, #tpu.memory_space<vmem>>, vector<1x8x1xf32>,
    return
  }
  func.func @transform_0(%arg0: i32) -> (i32, i32, i32) {
    %c0_i32 = arith.constant 0 : i32
    %c0_i32_0 = arith.constant 0 : i32
    %c0_i32_1 = arith.constant 0 : i32
    return %arg0, %c0_i32, %c0_i32_0 : i32, i32, i32
  }
  func.func @transform_1(%arg0: i32) -> (i32, i32) {
    %c0_i32 = arith.constant 0 : i32
    %c0_i32_0 = arith.constant 0 : i32
    %c0_i32_1 = arith.constant 0 : i32
    return %c0_i32, %c0_i32_0 : i32, i32
  }
  func.func @transform_2(%arg0: i32) -> (i32, i32, i32) {
    %c0_i32 = arith.constant 0 : i32
    %c0_i32_0 = arith.constant 0 : i32
    %c0_i32_1 = arith.constant 0 : i32
    return %arg0, %c0_i32, %c0_i32_0 : i32, i32, i32
  }
  func.func @transform_3(%arg0: i32) -> (i32, i32, i32) {
    %c0_i32 = arith.constant 0 : i32
    %c0_i32_0 = arith.constant 0 : i32
    %c0_i32_1 = arith.constant 0 : i32
    return %arg0, %c0_i32, %c0_i32_0 : i32, i32, i32
  }
}

</mosaic_0001>

<llo_original>
// kernel: unit_forward.2
$region0: #{unit_forward.2}
  #allocation0 [shape = 'u32[]', space=smem, size = 0x4, offset = 0x4, fixed_abs, tag = 'smem constant byte address 0x4 - core index']
  #allocation1 [shape = 'u32[144,128]{1,0:T(1,128)}', space=vmem, size = 0x12000, scoped, tag = 'internal scratch']
  %s0 = inlined_call_operand.vmem [shape: f32[2,8,384], index: 0, kind: input, shape index: {}]
  %s1 = inlined_call_operand.vmem [shape: f32[8,72], index: 1, kind: input, shape index: {}]
  %s2 = inlined_call_operand.vmem [shape: f32[2,8,1], index: 2, kind: output, shape index: {0}]
  %s3 = inlined_call_operand.vmem [shape: f32[2,8,1], index: 3, kind: output, shape index: {1}]
  %4 = xla_tuple %s2, %s3
  %s5 = sld [smem:[#allocation0]]
  $region49: #{unit_forward.2} parent=0
    _
  %s7 = ssub.s32 1, %s5
  %s8 = scalar_select 0, %s7, %s5
  loop: start=0, step=1, limit=4
  $region2: #{unit_forward.2} parent=0 // loop_pre_header
    _
  $region3: #{unit_forward.2} parent=0 // loop_header
    %s10 = sphi 0, %s14
    %p11 = scmp.ge.s32.totalorder %s10, 4
    %s20 = sphi 0, %s22
    %s23 = sphi 0, %s20
    %s24 = sphi 0, %s23
    %s40 = sphi 0, %s24
    %s44 = sphi 0, %s44
    %s46 = sphi 0, %s44
    %s47 = sphi 0, %s46
    %s61 = sphi 0, %s47
    %s67 = sphi 0, %s69
    %s70 = sphi 0, %s67
    %s71 = sphi 0, %s70
    %s87 = sphi 0, %s71
    %s93 = sphi 0, %s95
    %s96 = sphi 0, %s93
    %s97 = sphi 0, %s96
    %s113 = sphi 0, %s97
  $region4: #{unit_forward.2} parent=0 // loop_header_branch
    %13 = sbr.rel (%p11) target = $region8
  $region5: #{unit_forward.2} parent=0 // loop_body
    %s15 = ssub.s32 %s10, 1
    %s16 = ssub.s32 %s10, 2
    %s17 = sadd.s32 %s10, 1
    %s18 = ssub.s32 %s10, %s17
    %p19 = scmp.eq.s32.totalorder %s18, 0
    %s21 = sadd.s32 %s20, 1
    %s22 = scalar_select %p19, %s20, %s21
    %p25 = pneg %p19
    %p26 = scmp.eq.s32.totalorder %s10, 1
    %p27 = por %p25, %p26
    %p28 = scmp.ne.s32.totalorder %s20, %s23
    %p29 = scmp.eq.s32.totalorder %s10, 0
    %p30 = por %p28, %p29
    %p31 = scmp.ne.s32.totalorder %s20, %s23
    %p32 = scmp.eq.s32.totalorder %s15, 1
    %p33 = por %p31, %p32
    %p34 = scmp.ne.s32.totalorder %s23, %s24
    %p35 = scmp.eq.s32.totalorder %s15, 0
    %p36 = por %p34, %p35
    %p37 = scmp.ne.s32.totalorder %s23, %s24
    %p38 = scmp.eq.s32.totalorder %s16, 1
    %p39 = por %p37, %p38
    %p41 = scmp.ne.s32.totalorder %s24, %s40
    %p42 = scmp.eq.s32.totalorder %s16, 0
    %p43 = por %p41, %p42
    %s45 = sadd.s32 %s44, 1
    %p48 = scmp.eq.s32.totalorder %s10, 1
    %p49 = scmp.ne.s32.totalorder %s44, %s46
    %p50 = scmp.eq.s32.totalorder %s10, 0
    %p51 = por %p49, %p50
    %p52 = scmp.ne.s32.totalorder %s44, %s46
    %p53 = scmp.eq.s32.totalorder %s15, 1
    %p54 = por %p52, %p53
    %p55 = scmp.ne.s32.totalorder %s46, %s47
    %p56 = scmp.eq.s32.totalorder %s15, 0
    %p57 = por %p55, %p56
    %p58 = scmp.ne.s32.totalorder %s46, %s47
    %p59 = scmp.eq.s32.totalorder %s16, 1
    %p60 = por %p58, %p59
    %p62 = scmp.ne.s32.totalorder %s47, %s61
    %p63 = scmp.eq.s32.totalorder %s16, 0
    %p64 = por %p62, %p63
    %s65 = ssub.s32 %s10, %s17
    %p66 = scmp.eq.s32.totalorder %s65, 0
    %s68 = sadd.s32 %s67, 1
    %s69 = scalar_select %p66, %s67, %s68
    %p72 = pneg %p66
    %p73 = scmp.eq.s32.totalorder %s10, 1
    %p74 = por %p72, %p73
    %p75 = scmp.ne.s32.totalorder %s67, %s70
    %p76 = scmp.eq.s32.totalorder %s10, 0
    %p77 = por %p75, %p76
    %p78 = scmp.ne.s32.totalorder %s67, %s70
    %p79 = scmp.eq.s32.totalorder %s15, 1
    %p80 = por %p78, %p79
    %p81 = scmp.ne.s32.totalorder %s70, %s71
    %p82 = scmp.eq.s32.totalorder %s15, 0
    %p83 = por %p81, %p82
    %p84 = scmp.ne.s32.totalorder %s70, %s71
    %p85 = scmp.eq.s32.totalorder %s16, 1
    %p86 = por %p84, %p85
    %p88 = scmp.ne.s32.totalorder %s71, %s87
    %p89 = scmp.eq.s32.totalorder %s16, 0
    %p90 = por %p88, %p89
    %s91 = ssub.s32 %s10, %s17
    %p92 = scmp.eq.s32.totalorder %s91, 0
    %s94 = sadd.s32 %s93, 1
    %s95 = scalar_select %p92, %s93, %s94
    %p98 = pneg %p92
    %p99 = scmp.eq.s32.totalorder %s10, 1
    %p100 = por %p98, %p99
    %p101 = scmp.ne.s32.totalorder %s93, %s96
    %p102 = scmp.eq.s32.totalorder %s10, 0
    %p103 = por %p101, %p102
    %p104 = scmp.ne.s32.totalorder %s93, %s96
    %p105 = scmp.eq.s32.totalorder %s15, 1
    %p106 = por %p104, %p105
    %p107 = scmp.ne.s32.totalorder %s96, %s97
    %p108 = scmp.eq.s32.totalorder %s15, 0
    %p109 = por %p107, %p108
    %p110 = scmp.ne.s32.totalorder %s96, %s97
    %p111 = scmp.eq.s32.totalorder %s16, 1
    %p112 = por %p110, %p111
    %p114 = scmp.ne.s32.totalorder %s97, %s113
    %p115 = scmp.eq.s32.totalorder %s16, 0
    %p116 = por %p114, %p115
    %p117 = scmp.le.s32.totalorder 1, %s10
    %p118 = scmp.lt.s32.totalorder %s10, 3
    %p119 = pnand %p117, %p118
    %p120 = pneg %p119
    // Predicated region
    $region9: #{unit_forward.2} parent=5 // pred_check
      _
    $region10: #{unit_forward.2} parent=5 // pred_check_branch
      %122 = sbr.rel (%p119) target = $region12
    $region11: #{unit_forward.2} parent=5 // pred_region
      %s123 = ssub.s32 %s10, 1
      // Predicated region
      $region13: #{unit_forward.2} parent=11 // pred_check
        %p124 = pneg %p57
      $region14: #{unit_forward.2} parent=11 // pred_check_branch
        %126 = sbr.rel (%p124) target = $region16
      $region15: #{unit_forward.2} parent=11 // pred_region
        _
      $region16: #{unit_forward.2} parent=11 // pred_fallthru
        _
    $region12: #{unit_forward.2} parent=5 // pred_fallthru
      _
    %p127 = scmp.lt.s32.totalorder %s10, 2
    // Predicated region
    $region17: #{unit_forward.2} parent=5 // pred_check
      %p128 = pneg %p127
    $region18: #{unit_forward.2} parent=5 // pred_check_branch
      %130 = sbr.rel (%p128) target = $region20
    $region19: #{unit_forward.2} parent=5 // pred_region
      // Predicated region
      $region21: #{unit_forward.2} parent=19 // pred_check
        %p131 = pneg %p30
      $region22: #{unit_forward.2} parent=19 // pred_check_branch
        %133 = sbr.rel (%p131) target = $region24
      $region23: #{unit_forward.2} parent=19 // pred_region
        %p134 = scmp.lt.s32.totalorder %s10, 1
        %s135 = scalar_select %p134, %s10, 1
        %s136 = smul.addr %s135, 3
        %s137 = smul.addr %s136, 8
        %s138 = scalar_lea.vmem %s0, %s137
      $region24: #{unit_forward.2} parent=19 // pred_fallthru
        _
    $region20: #{unit_forward.2} parent=5 // pred_fallthru
      _
    %p139 = scmp.le.s32.totalorder 1, %s10
    %p140 = scmp.lt.s32.totalorder %s10, 3
    %p141 = pnand %p139, %p140
    %p142 = pneg %p141
    // Predicated region
    $region25: #{unit_forward.2} parent=5 // pred_check
      _
    $region26: #{unit_forward.2} parent=5 // pred_check_branch
      %144 = sbr.rel (%p141) target = $region28
    $region27: #{unit_forward.2} parent=5 // pred_region
      %s145 = ssub.s32 %s10, 1
      %p146 = scmp.lt.s32.totalorder %s15, 1
      %s147 = scalar_select %p146, %s15, 1
      %s148 = smul.addr %s147, 3
      %s149 = smul.addr %s148, 8
      %s150 = scalar_lea.vmem %s0, %s149
      %p151 = pneg %p36
      %p152 = pneg %p33
      %p153 = pneg %p57
      %p154 = pneg %p54
      %p155 = pneg %p83
      %p156 = pneg %p80
      %p157 = scmp.lt.s32.totalorder %s15, 1
      %s158 = scalar_select %p157, %s15, 1
      %s159 = smul.addr %s158, 8
      %s160 = scalar_lea.vmem %s2, %s159
      %p161 = pneg %p109
      %p162 = pneg %p106
      %p163 = scmp.lt.s32.totalorder %s15, 1
      %s164 = scalar_select %p163, %s15, 1
      %s165 = smul.addr %s164, 8
      %s166 = scalar_lea.vmem %s3, %s165
      %p167 = scmp.lt.s32.totalorder %s15, 1
      %s168 = scalar_select %p167, %s15, 1
      %s169 = smul.addr %s168, 3
      %s170 = smul.addr %s169, 8
      %s171 = scalar_lea.vmem %s0, %s170
      %p172 = scmp.lt.s32.totalorder %s15, 1
      %s173 = scalar_select %p172, %s15, 1
      %s174 = smul.addr %s173, 8
      %s175 = scalar_lea.vmem %s2, %s174
      %p176 = scmp.lt.s32.totalorder %s15, 1
      %s177 = scalar_select %p176, %s15, 1
      %s178 = smul.addr %s177, 8
      %s179 = scalar_lea.vmem %s3, %s178
      %v180 = vld [vmem:[%s171] sm:$0xff]
      %v181 = vld [vmem:[%s171 + $0x8] sm:$0xff]
      %v182 = vld [vmem:[%s171 + $0x10] sm:$0xff]
      %183 = vrot.lane.b32.xlu0 %v180, 127
      %v184 = vpop.permute.xlu0 %183
      %185 = vrot.lane.b32.xlu0 %v181, 127
      %v186 = vpop.permute.xlu0 %185
      %187 = vrot.lane.b32.xlu0 %v182, 127
      %v188 = vpop.permute.xlu0 %187
      %v189 = vlaneseq
      %v190 = vand.u32 %v189, 127
      %vm191 = vcmp.lt.s32.totalorder %v190, 127
      %v192 = vsel %vm191, %v186, %v188
      %v193 = vsel %vm191, %v184, %v186
      %v194 = vsel %vm191, %v188, %v184
      %195 = vrot.lane.b32.xlu0 %v180, 126
      %v196 = vpop.permute.xlu0 %195
      %197 = vrot.lane.b32.xlu0 %v181, 126
      %v198 = vpop.permute.xlu0 %197
      %199 = vrot.lane.b32.xlu0 %v182, 126
      %v200 = vpop.permute.xlu0 %199
      %vm201 = vcmp.lt.s32.totalorder %v190, 126
      %v202 = vsel %vm201, %v198, %v200
      %v203 = vsel %vm201, %v196, %v198
      %v204 = vsel %vm201, %v200, %v196
      %205 = vrot.lane.b32.xlu0 %v180, 110
      %v206 = vpop.permute.xlu0 %205
      %207 = vrot.lane.b32.xlu0 %v181, 110
      %v208 = vpop.permute.xlu0 %207
      %209 = vrot.lane.b32.xlu0 %v182, 110
      %v210 = vpop.permute.xlu0 %209
      %vm211 = vcmp.lt.s32.totalorder %v190, 110
      %v212 = vsel %vm211, %v208, %v210
      %v213 = vsel %vm211, %v206, %v208
      %v214 = vsel %vm211, %v210, %v206
      %215 = vrot.lane.b32.xlu0 %v180, 109
      %v216 = vpop.permute.xlu0 %215
      %217 = vrot.lane.b32.xlu0 %v181, 109
      %v218 = vpop.permute.xlu0 %217
      %219 = vrot.lane.b32.xlu0 %v182, 109
      %v220 = vpop.permute.xlu0 %219
      %vm221 = vcmp.lt.s32.totalorder %v190, 109
      %v222 = vsel %vm221, %v218, %v220
      %v223 = vsel %vm221, %v216, %v218
      %v224 = vsel %vm221, %v220, %v216
      %225 = vrot.lane.b32.xlu0 %v180, 108
      %v226 = vpop.permute.xlu0 %225
      %227 = vrot.lane.b32.xlu0 %v181, 108
      %v228 = vpop.permute.xlu0 %227
      %229 = vrot.lane.b32.xlu0 %v182, 108
      %v230 = vpop.permute.xlu0 %229
      %vm231 = vcmp.lt.s32.totalorder %v190, 108
      %v232 = vsel %vm231, %v228, %v230
      %v233 = vsel %vm231, %v226, %v228
      %v234 = vsel %vm231, %v230, %v226
      %235 = vrot.lane.b32.xlu0 %v180, 92
      %v236 = vpop.permute.xlu0 %235
      %237 = vrot.lane.b32.xlu0 %v181, 92
      %v238 = vpop.permute.xlu0 %237
      %239 = vrot.lane.b32.xlu0 %v182, 92
      %v240 = vpop.permute.xlu0 %239
      %vm241 = vcmp.lt.s32.totalorder %v190, 92
      %v242 = vsel %vm241, %v238, %v240
      %v243 = vsel %vm241, %v236, %v238
      %v244 = vsel %vm241, %v240, %v236
      %245 = vrot.lane.b32.xlu0 %v180, 91
      %v246 = vpop.permute.xlu0 %245
      %247 = vrot.lane.b32.xlu0 %v181, 91
      %v248 = vpop.permute.xlu0 %247
      %249 = vrot.lane.b32.xlu0 %v182, 91
      %v250 = vpop.permute.xlu0 %249
      %vm251 = vcmp.lt.s32.totalorder %v190, 91
      %v252 = vsel %vm251, %v248, %v250
      %v253 = vsel %vm251, %v246, %v248
      %v254 = vsel %vm251, %v250, %v246
      %255 = vrot.lane.b32.xlu0 %v180, 90
      %v256 = vpop.permute.xlu0 %255
      %257 = vrot.lane.b32.xlu0 %v181, 90
      %v258 = vpop.permute.xlu0 %257
      %259 = vrot.lane.b32.xlu0 %v182, 90
      %v260 = vpop.permute.xlu0 %259
      %vm261 = vcmp.lt.s32.totalorder %v190, 90
      %v262 = vsel %vm261, %v258, %v260
      %v263 = vsel %vm261, %v256, %v258
      %v264 = vsel %vm261, %v260, %v256
      %v265 = vld [vmem:[%s1] sm:$0xff]
      %vm266 = vcmask 588800
      %v268 = vsel %vm266, %v265, 0
      %270 = vmatprep.subr.mxu0 0.0
      %271 = vmatpush1.msra.mxu0 0.0
      %272 = vmatprep.subr.mxu0 0.0
      %273 = vmatpush1.msra.mxu0 0.0
      %274 = vmatprep.subr.mxu0 0.0
      %275 = vmatpush1.msra.mxu0 0.0
      %276 = vmatprep.subr.mxu0 0.0
      %277 = vmatpush1.msra.mxu0 0.0
      %278 = vmatprep.subr.mxu0 0.0
      %279 = vmatpush1.msra.mxu0 0.0
      %280 = vmatprep.subr.mxu0 0.0
      %281 = vmatpush1.msra.mxu0 0.0
      %282 = vmatprep.subr.mxu0 0.0
      %283 = vmatpush1.msra.mxu0 0.0
      %284 = vmatprep.subr.mxu0 %v262
      %285 = vmatpush1.msra.mxu0 %v263
      %286 = vmatprep.subr.mxu0 %v252
      %287 = vmatpush1.msra.mxu0 %v253
      %288 = vmatprep.subr.mxu0 %v242
      %289 = vmatpush1.msra.mxu0 %v243
      %290 = vmatprep.subr.mxu0 %v232
      %291 = vmatpush1.msra.mxu0 %v233
      %292 = vmatprep.subr.mxu0 %v222
      %293 = vmatpush1.msra.mxu0 %v223
      %294 = vmatprep.subr.mxu0 %v212
      %295 = vmatpush1.msra.mxu0 %v213
      %296 = vmatprep.subr.mxu0 %v202
      %297 = vmatpush1.msra.mxu0 %v203
      %298 = vmatprep.subr.mxu0 %v192
      %299 = vmatpush1.msra.mxu0 %v193
      %300 = vmatprep.subr.mxu0 %v181
      %301 = vmatpush1.msra.mxu0 %v180
      %302 = vmatprep.subr.mxu0 0.0
      %303 = vmatpush2.msra.mxu0 0.0
      %304 = vmatprep.subr.mxu0 0.0
      %305 = vmatpush2.msra.mxu0 0.0
      %306 = vmatprep.subr.mxu0 0.0
      %307 = vmatpush2.msra.mxu0 0.0
      %308 = vmatprep.subr.mxu0 0.0
      %309 = vmatpush2.msra.mxu0 0.0
      %310 = vmatprep.subr.mxu0 0.0
      %311 = vmatpush2.msra.mxu0 0.0
      %312 = vmatprep.subr.mxu0 0.0
      %313 = vmatpush2.msra.mxu0 0.0
      %314 = vmatprep.subr.mxu0 0.0
      %315 = vmatpush2.msra.mxu0 0.0
      %316 = vmatprep.subr.mxu0 0.0
      %317 = vmatpush2.msra.mxu0 0.0
      %318 = vmatprep.subr.mxu0 0.0
      %319 = vmatpush2.msra.mxu0 0.0
      %320 = vmatprep.subr.mxu0 0.0
      %321 = vmatpush2.msra.mxu0 0.0
      %322 = vmatprep.subr.mxu0 0.0
      %323 = vmatpush2.msra.mxu0 0.0
      %324 = vmatprep.subr.mxu0 0.0
      %325 = vmatpush2.msra.mxu0 0.0
      %326 = vmatprep.subr.mxu0 0.0
      %327 = vmatpush2.msra.mxu0 0.0
      %328 = vmatprep.subr.mxu0 0.0
      %329 = vmatpush2.msra.mxu0 0.0
      %330 = vmatprep.subr.mxu0 0.0
      %331 = vmatpush2.msra.mxu0 0.0
      %332 = vmatprep.subr.mxu0 0.0
      %333 = vmatpush2.msra.mxu0 0.0
      %334 = vmatprep.mubr.f32.mxu0 0.0
      %335 = vmatmul.mubr.f32.gmra.mxu0 %v268
      %v336 = vpop.f32.mrf.mxu0
      %v337 = vadd.f32 0.0, %v336
      %v338 = vpop.f32.mrf.mxu0
      %v339 = vadd.f32 0.0, %v338
      %340 = vdwg.mxu0
      %341 = vmatprep.subr.mxu0 0.0
      %342 = vmatpush1.msra.mxu0 0.0
      %343 = vmatprep.subr.mxu0 0.0
      %344 = vmatpush1.msra.mxu0 0.0
      %345 = vmatprep.subr.mxu0 0.0
      %346 = vmatpush1.msra.mxu0 0.0
      %347 = vmatprep.subr.mxu0 0.0
      %348 = vmatpush1.msra.mxu0 0.0
      %349 = vmatprep.subr.mxu0 0.0
      %350 = vmatpush1.msra.mxu0 0.0
      %351 = vmatprep.subr.mxu0 0.0
      %352 = vmatpush1.msra.mxu0 0.0
      %353 = vmatprep.subr.mxu0 0.0
      %354 = vmatpush1.msra.mxu0 0.0
      %355 = vmatprep.subr.mxu0 0.0
      %356 = vmatpush1.msra.mxu0 %v264
      %357 = vmatprep.subr.mxu0 0.0
      %358 = vmatpush1.msra.mxu0 %v254
      %359 = vmatprep.subr.mxu0 0.0
      %360 = vmatpush1.msra.mxu0 %v244
      %361 = vmatprep.subr.mxu0 0.0
      %362 = vmatpush1.msra.mxu0 %v234
      %363 = vmatprep.subr.mxu0 0.0
      %364 = vmatpush1.msra.mxu0 %v224
      %365 = vmatprep.subr.mxu0 0.0
      %366 = vmatpush1.msra.mxu0 %v214
      %367 = vmatprep.subr.mxu0 0.0
      %368 = vmatpush1.msra.mxu0 %v204
      %369 = vmatprep.subr.mxu0 0.0
      %370 = vmatpush1.msra.mxu0 %v194
      %371 = vmatprep.subr.mxu0 0.0
      %372 = vmatpush1.msra.mxu0 %v182
      %373 = vmatprep.subr.mxu0 0.0
      %374 = vmatpush2.msra.mxu0 0.0
      %375 = vmatprep.subr.mxu0 0.0
      %376 = vmatpush2.msra.mxu0 0.0
      %377 = vmatprep.subr.mxu0 0.0
      %378 = vmatpush2.msra.mxu0 0.0
      %379 = vmatprep.subr.mxu0 0.0
      %380 = vmatpush2.msra.mxu0 0.0
      %381 = vmatprep.subr.mxu0 0.0
      %382 = vmatpush2.msra.mxu0 0.0
      %383 = vmatprep.subr.mxu0 0.0
      %384 = vmatpush2.msra.mxu0 0.0
      %385 = vmatprep.subr.mxu0 0.0
      %386 = vmatpush2.msra.mxu0 0.0
      %387 = vmatprep.subr.mxu0 0.0
      %388 = vmatpush2.msra.mxu0 0.0
      %389 = vmatprep.subr.mxu0 0.0
      %390 = vmatpush2.msra.mxu0 0.0
      %391 = vmatprep.subr.mxu0 0.0
      %392 = vmatpush2.msra.mxu0 0.0
      %393 = vmatprep.subr.mxu0 0.0
      %394 = vmatpush2.msra.mxu0 0.0
      %395 = vmatprep.subr.mxu0 0.0
      %396 = vmatpush2.msra.mxu0 0.0
      %397 = vmatprep.subr.mxu0 0.0
      %398 = vmatpush2.msra.mxu0 0.0
      %399 = vmatprep.subr.mxu0 0.0
      %400 = vmatpush2.msra.mxu0 0.0
      %401 = vmatprep.subr.mxu0 0.0
      %402 = vmatpush2.msra.mxu0 0.0
      %403 = vmatprep.subr.mxu0 0.0
      %404 = vmatpush2.msra.mxu0 0.0
      %405 = vmatprep.mubr.f32.mxu0 0.0
      %406 = vmatmul.mubr.f32.gmra.mxu0 %v268
      %v407 = vpop.f32.mrf.mxu0
      %v408 = vadd.f32 0.0, %v407
      %v409 = vpop.f32.mrf.mxu0
      %410 = vdwg.mxu0
      %v411 = vadd.s32 %v190, 128
      %v412 = vadd.s32 %v190, 256
      %vm413 = vcmp.lt.s32.totalorder %v190, 0
      %v414 = vsub.s32 0, %v190
      %v415 = vsel %vm413, %v414, %v190
      %v416 = vmul.u32.u64.compose %v415, 3817748708
      %v417 = vextract.low.u32 %v416
      %v418 = vextract.high.u32 %v416
      %v419 = vshrl.u32 %v418, 4
      %v420 = vmul.u32 %v419, 18
      %v421 = vsub.s32 %v415, %v420
      %v422 = vsub.s32 0, %v421
      %v423 = vsel %vm413, %v422, %v421
      %vm424 = vcmp.lt.s32.totalorder %v411, 0
      %v425 = vsub.s32 0, %v411
      %v426 = vsel %vm424, %v425, %v411
      %v427 = vmul.u32.u64.compose %v426, 3817748708
      %v428 = vextract.low.u32 %v427
      %v429 = vextract.high.u32 %v427
      %v430 = vshrl.u32 %v429, 4
      %v431 = vmul.u32 %v430, 18
      %v432 = vsub.s32 %v426, %v431
      %v433 = vsub.s32 0, %v432
      %v434 = vsel %vm424, %v433, %v432
      %vm435 = vcmp.lt.s32.totalorder %v412, 0
      %v436 = vsub.s32 0, %v412
      %v437 = vsel %vm435, %v436, %v412
      %v438 = vmul.u32.u64.compose %v437, 3817748708
      %v439 = vextract.low.u32 %v438
      %v440 = vextract.high.u32 %v438
      %v441 = vshrl.u32 %v440, 4
      %v442 = vmul.u32 %v441, 18
      %v443 = vsub.s32 %v437, %v442
      %v444 = vsub.s32 0, %v443
      %v445 = vsel %vm435, %v444, %v443
      %vm446 = vcmp.ne.s32.totalorder %v423, 0
      %vm447 = vcmp.ne.s32.totalorder %v434, 0
      %vm448 = vcmp.ne.s32.totalorder %v445, 0
      %vm449 = vcmp.lt.s32.totalorder %v423, 0
      %vm450 = vcmp.lt.s32.totalorder %v434, 0
      %vm451 = vcmp.lt.s32.totalorder %v445, 0
      %vm452 = vmand %vm449, %vm446
      %vm453 = vmand %vm450, %vm447
      %vm454 = vmand %vm451, %vm448
      %v455 = vadd.s32 %v423, 18
      %v456 = vadd.s32 %v434, 18
      %v457 = vadd.s32 %v445, 18
      %v458 = vsel %vm452, %v455, %v423
      %v459 = vsel %vm453, %v456, %v434
      %v460 = vsel %vm454, %v457, %v445
      %vm461 = vcmp.lt.s32.totalorder %v458, 16
      %vm462 = vcmp.lt.s32.totalorder %v459, 16
      %vm463 = vcmp.lt.s32.totalorder %v460, 16
      %v464 = vsel %vm461, 1, 0
      %v465 = vsel %vm462, 1, 0
      %v466 = vsel %vm463, 1, 0
      %v467 = vcvt.s32.f32 %v464
      %v468 = vcvt.s32.f32 %v465
      %v469 = vcvt.s32.f32 %v466
      %v470 = vmul.f32 %v337, %v467
      %v471 = vmul.f32 %v339, %v468
      %v472 = vmul.f32 %v408, %v469
      %v473 = vadd.f32 %v470, %v471
      %vm474 = vcmask 261120
      %v475 = vsel %vm474, %v472, 0.0
      %v476 = vadd.f32 %v473, %v475
      %477 = vadd.xlane.f32.xlu0 %v476
      %v478 = vpop.xlane.xlu0 %477
      %vm479 = vcmask 7168
      %480 = vst.msk [vmem:[%s175] sm:$0xff] %vm479, %v478
      %v481 = vmul.f32 %v470, %v337
      %v482 = vmul.f32 %v471, %v339
      %v483 = vmul.f32 %v472, %v408
      %v484 = vadd.f32 %v481, %v482
      %v485 = vsel %vm474, %v483, 0.0
      %v486 = vadd.f32 %v484, %v485
      %487 = vadd.xlane.f32.xlu0 %v486
      %v488 = vpop.xlane.xlu0 %487
      %489 = vst.msk [vmem:[%s179] sm:$0xff] %vm479, %v488
      %p490 = scmp.lt.s32.totalorder %s15, 1
      %s491 = scalar_select %p490, %s15, 1
      %s492 = smul.addr %s491, 8
      %s493 = scalar_lea.vmem %s2, %s492
      %p494 = scmp.lt.s32.totalorder %s15, 1
      %s495 = scalar_select %p494, %s15, 1
      %s496 = smul.addr %s495, 8
      %s497 = scalar_lea.vmem %s3, %s496
      // Predicated region
      $region29: #{unit_forward.2} parent=27 // pred_check
        %p498 = pneg %p80
      $region30: #{unit_forward.2} parent=27 // pred_check_branch
        %500 = sbr.rel (%p498) target = $region32
      $region31: #{unit_forward.2} parent=27 // pred_region
        _
      $region32: #{unit_forward.2} parent=27 // pred_fallthru
        _
      // Predicated region
      $region33: #{unit_forward.2} parent=27 // pred_check
        %p501 = pneg %p106
      $region34: #{unit_forward.2} parent=27 // pred_check_branch
        %503 = sbr.rel (%p501) target = $region36
      $region35: #{unit_forward.2} parent=27 // pred_region
        _
      $region36: #{unit_forward.2} parent=27 // pred_fallthru
        _
    $region28: #{unit_forward.2} parent=5 // pred_fallthru
      _
    %p504 = scmp.le.s32.totalorder 2, %s10
    // Predicated region
    $region37: #{unit_forward.2} parent=5 // pred_check
      %p505 = pneg %p504
    $region38: #{unit_forward.2} parent=5 // pred_check_branch
      %507 = sbr.rel (%p505) target = $region40
    $region39: #{unit_forward.2} parent=5 // pred_region
      %s508 = ssub.s32 %s10, 2
      // Predicated region
      $region41: #{unit_forward.2} parent=39 // pred_check
        %p509 = pneg %p86
      $region42: #{unit_forward.2} parent=39 // pred_check_branch
        %511 = sbr.rel (%p509) target = $region44
      $region43: #{unit_forward.2} parent=39 // pred_region
        %p512 = scmp.lt.s32.totalorder %s16, 1
        %s513 = scalar_select %p512, %s16, 1
        %s514 = smul.addr %s513, 8
        %s515 = scalar_lea.vmem %s2, %s514
      $region44: #{unit_forward.2} parent=39 // pred_fallthru
        _
      // Predicated region
      $region45: #{unit_forward.2} parent=39 // pred_check
        %p516 = pneg %p112
      $region46: #{unit_forward.2} parent=39 // pred_check_branch
        %518 = sbr.rel (%p516) target = $region48
      $region47: #{unit_forward.2} parent=39 // pred_region
        %p519 = scmp.lt.s32.totalorder %s16, 1
        %s520 = scalar_select %p519, %s16, 1
        %s521 = smul.addr %s520, 8
        %s522 = scalar_lea.vmem %s3, %s521
      $region48: #{unit_forward.2} parent=39 // pred_fallthru
        _
    $region40: #{unit_forward.2} parent=5 // pred_fallthru
      _
  $region6: #{unit_forward.2} parent=0 // loop_footer
    %s14 = sadd.s32 1, %s10
  $region7: #{unit_forward.2} parent=0 // loop_footer_branch
    %9 = sbr.rel target = $region3
  $region8: #{unit_forward.2} parent=0 // loop_exit
    _

// kernel: unit_forward.3
$region0: #{unit_forward.3}
  #allocation0 [shape = 'u32[]', space=smem, size = 0x4, offset = 0x4, fixed_abs, tag = 'smem constant byte address 0x4 - core index']
  #allocation1 [shape = 'u32[144,128]{1,0:T(1,128)}', space=vmem, size = 0x12000, scoped, tag = 'internal scratch']
  %s0 = inlined_call_operand.vmem [shape: f32[2,8,384], index: 0, kind: input, shape index: {}]
  %s1 = inlined_call_operand.vmem [shape: f32[8,72], index: 1, kind: input, shape index: {}]
  %s2 = inlined_call_operand.vmem [shape: f32[8,1], index: 2, kind: input, shape index: {}]
  %s3 = inlined_call_operand.vmem [shape: f32[8,1], index: 3, kind: input, shape index: {}]
  %s4 = inlined_call_operand.vmem [shape: f32[2,8,288], index: 4, kind: output, shape index: {}]
  %s5 = sld [smem:[#allocation0]]
  $region49: #{unit_forward.3} parent=0
    _
  %s7 = ssub.s32 1, %s5
  %s8 = scalar_select 0, %s7, %s5
  loop: start=0, step=1, limit=4
  $region2: #{unit_forward.3} parent=0 // loop_pre_header
    _
  $region3: #{unit_forward.3} parent=0 // loop_header
    %s10 = sphi 0, %s14
    %p11 = scmp.ge.s32.totalorder %s10, 4
    %s20 = sphi 0, %s22
    %s23 = sphi 0, %s20
    %s24 = sphi 0, %s23
    %s40 = sphi 0, %s24
    %s44 = sphi 0, %s44
    %s46 = sphi 0, %s44
    %s47 = sphi 0, %s46
    %s61 = sphi 0, %s47
    %s65 = sphi 0, %s65
    %s67 = sphi 0, %s65
    %s68 = sphi 0, %s67
    %s82 = sphi 0, %s68
    %s86 = sphi 0, %s86
    %s88 = sphi 0, %s86
    %s89 = sphi 0, %s88
    %s103 = sphi 0, %s89
    %s109 = sphi 0, %s111
    %s112 = sphi 0, %s109
    %s113 = sphi 0, %s112
    %s129 = sphi 0, %s113
  $region4: #{unit_forward.3} parent=0 // loop_header_branch
    %13 = sbr.rel (%p11) target = $region8
  $region5: #{unit_forward.3} parent=0 // loop_body
    %s15 = ssub.s32 %s10, 1
    %s16 = ssub.s32 %s10, 2
    %s17 = sadd.s32 %s10, 1
    %s18 = ssub.s32 %s10, %s17
    %p19 = scmp.eq.s32.totalorder %s18, 0
    %s21 = sadd.s32 %s20, 1
    %s22 = scalar_select %p19, %s20, %s21
    %p25 = pneg %p19
    %p26 = scmp.eq.s32.totalorder %s10, 1
    %p27 = por %p25, %p26
    %p28 = scmp.ne.s32.totalorder %s20, %s23
    %p29 = scmp.eq.s32.totalorder %s10, 0
    %p30 = por %p28, %p29
    %p31 = scmp.ne.s32.totalorder %s20, %s23
    %p32 = scmp.eq.s32.totalorder %s15, 1
    %p33 = por %p31, %p32
    %p34 = scmp.ne.s32.totalorder %s23, %s24
    %p35 = scmp.eq.s32.totalorder %s15, 0
    %p36 = por %p34, %p35
    %p37 = scmp.ne.s32.totalorder %s23, %s24
    %p38 = scmp.eq.s32.totalorder %s16, 1
    %p39 = por %p37, %p38
    %p41 = scmp.ne.s32.totalorder %s24, %s40
    %p42 = scmp.eq.s32.totalorder %s16, 0
    %p43 = por %p41, %p42
    %s45 = sadd.s32 %s44, 1
    %p48 = scmp.eq.s32.totalorder %s10, 1
    %p49 = scmp.ne.s32.totalorder %s44, %s46
    %p50 = scmp.eq.s32.totalorder %s10, 0
    %p51 = por %p49, %p50
    %p52 = scmp.ne.s32.totalorder %s44, %s46
    %p53 = scmp.eq.s32.totalorder %s15, 1
    %p54 = por %p52, %p53
    %p55 = scmp.ne.s32.totalorder %s46, %s47
    %p56 = scmp.eq.s32.totalorder %s15, 0
    %p57 = por %p55, %p56
    %p58 = scmp.ne.s32.totalorder %s46, %s47
    %p59 = scmp.eq.s32.totalorder %s16, 1
    %p60 = por %p58, %p59
    %p62 = scmp.ne.s32.totalorder %s47, %s61
    %p63 = scmp.eq.s32.totalorder %s16, 0
    %p64 = por %p62, %p63
    %s66 = sadd.s32 %s65, 1
    %p69 = scmp.eq.s32.totalorder %s10, 1
    %p70 = scmp.ne.s32.totalorder %s65, %s67
    %p71 = scmp.eq.s32.totalorder %s10, 0
    %p72 = por %p70, %p71
    %p73 = scmp.ne.s32.totalorder %s65, %s67
    %p74 = scmp.eq.s32.totalorder %s15, 1
    %p75 = por %p73, %p74
    %p76 = scmp.ne.s32.totalorder %s67, %s68
    %p77 = scmp.eq.s32.totalorder %s15, 0
    %p78 = por %p76, %p77
    %p79 = scmp.ne.s32.totalorder %s67, %s68
    %p80 = scmp.eq.s32.totalorder %s16, 1
    %p81 = por %p79, %p80
    %p83 = scmp.ne.s32.totalorder %s68, %s82
    %p84 = scmp.eq.s32.totalorder %s16, 0
    %p85 = por %p83, %p84
    %s87 = sadd.s32 %s86, 1
    %p90 = scmp.eq.s32.totalorder %s10, 1
    %p91 = scmp.ne.s32.totalorder %s86, %s88
    %p92 = scmp.eq.s32.totalorder %s10, 0
    %p93 = por %p91, %p92
    %p94 = scmp.ne.s32.totalorder %s86, %s88
    %p95 = scmp.eq.s32.totalorder %s15, 1
    %p96 = por %p94, %p95
    %p97 = scmp.ne.s32.totalorder %s88, %s89
    %p98 = scmp.eq.s32.totalorder %s15, 0
    %p99 = por %p97, %p98
    %p100 = scmp.ne.s32.totalorder %s88, %s89
    %p101 = scmp.eq.s32.totalorder %s16, 1
    %p102 = por %p100, %p101
    %p104 = scmp.ne.s32.totalorder %s89, %s103
    %p105 = scmp.eq.s32.totalorder %s16, 0
    %p106 = por %p104, %p105
    %s107 = ssub.s32 %s10, %s17
    %p108 = scmp.eq.s32.totalorder %s107, 0
    %s110 = sadd.s32 %s109, 1
    %s111 = scalar_select %p108, %s109, %s110
    %p114 = pneg %p108
    %p115 = scmp.eq.s32.totalorder %s10, 1
    %p116 = por %p114, %p115
    %p117 = scmp.ne.s32.totalorder %s109, %s112
    %p118 = scmp.eq.s32.totalorder %s10, 0
    %p119 = por %p117, %p118
    %p120 = scmp.ne.s32.totalorder %s109, %s112
    %p121 = scmp.eq.s32.totalorder %s15, 1
    %p122 = por %p120, %p121
    %p123 = scmp.ne.s32.totalorder %s112, %s113
    %p124 = scmp.eq.s32.totalorder %s15, 0
    %p125 = por %p123, %p124
    %p126 = scmp.ne.s32.totalorder %s112, %s113
    %p127 = scmp.eq.s32.totalorder %s16, 1
    %p128 = por %p126, %p127
    %p130 = scmp.ne.s32.totalorder %s113, %s129
    %p131 = scmp.eq.s32.totalorder %s16, 0
    %p132 = por %p130, %p131
    %p133 = scmp.le.s32.totalorder 1, %s10
    %p134 = scmp.lt.s32.totalorder %s10, 3
    %p135 = pnand %p133, %p134
    %p136 = pneg %p135
    // Predicated region
    $region9: #{unit_forward.3} parent=5 // pred_check
      _
    $region10: #{unit_forward.3} parent=5 // pred_check_branch
      %138 = sbr.rel (%p135) target = $region12
    $region11: #{unit_forward.3} parent=5 // pred_region
      %s139 = ssub.s32 %s10, 1
      // Predicated region
      $region13: #{unit_forward.3} parent=11 // pred_check
        %p140 = pneg %p57
      $region14: #{unit_forward.3} parent=11 // pred_check_branch
        %142 = sbr.rel (%p140) target = $region16
      $region15: #{unit_forward.3} parent=11 // pred_region
        _
      $region16: #{unit_forward.3} parent=11 // pred_fallthru
        _
      // Predicated region
      $region17: #{unit_forward.3} parent=11 // pred_check
        %p143 = pneg %p78
      $region18: #{unit_forward.3} parent=11 // pred_check_branch
        %145 = sbr.rel (%p143) target = $region20
      $region19: #{unit_forward.3} parent=11 // pred_region
        _
      $region20: #{unit_forward.3} parent=11 // pred_fallthru
        _
      // Predicated region
      $region21: #{unit_forward.3} parent=11 // pred_check
        %p146 = pneg %p99
      $region22: #{unit_forward.3} parent=11 // pred_check_branch
        %148 = sbr.rel (%p146) target = $region24
      $region23: #{unit_forward.3} parent=11 // pred_region
        _
      $region24: #{unit_forward.3} parent=11 // pred_fallthru
        _
    $region12: #{unit_forward.3} parent=5 // pred_fallthru
      _
    %p149 = scmp.lt.s32.totalorder %s10, 2
    // Predicated region
    $region25: #{unit_forward.3} parent=5 // pred_check
      %p150 = pneg %p149
    $region26: #{unit_forward.3} parent=5 // pred_check_branch
      %152 = sbr.rel (%p150) target = $region28
    $region27: #{unit_forward.3} parent=5 // pred_region
      // Predicated region
      $region29: #{unit_forward.3} parent=27 // pred_check
        %p153 = pneg %p30
      $region30: #{unit_forward.3} parent=27 // pred_check_branch
        %155 = sbr.rel (%p153) target = $region32
      $region31: #{unit_forward.3} parent=27 // pred_region
        %p156 = scmp.lt.s32.totalorder %s10, 1
        %s157 = scalar_select %p156, %s10, 1
        %s158 = smul.addr %s157, 3
        %s159 = smul.addr %s158, 8
        %s160 = scalar_lea.vmem %s0, %s159
      $region32: #{unit_forward.3} parent=27 // pred_fallthru
        _
    $region28: #{unit_forward.3} parent=5 // pred_fallthru
      _
    %p161 = scmp.le.s32.totalorder 1, %s10
    %p162 = scmp.lt.s32.totalorder %s10, 3
    %p163 = pnand %p161, %p162
    %p164 = pneg %p163
    // Predicated region
    $region33: #{unit_forward.3} parent=5 // pred_check
      _
    $region34: #{unit_forward.3} parent=5 // pred_check_branch
      %166 = sbr.rel (%p163) target = $region36
    $region35: #{unit_forward.3} parent=5 // pred_region
      %s167 = ssub.s32 %s10, 1
      %p168 = scmp.lt.s32.totalorder %s15, 1
      %s169 = scalar_select %p168, %s15, 1
      %s170 = smul.addr %s169, 3
      %s171 = smul.addr %s170, 8
      %s172 = scalar_lea.vmem %s0, %s171
      %p173 = pneg %p36
      %p174 = pneg %p33
      %p175 = pneg %p57
      %p176 = pneg %p54
      %p177 = pneg %p78
      %p178 = pneg %p75
      %p179 = pneg %p99
      %p180 = pneg %p96
      %p181 = pneg %p125
      %p182 = pneg %p122
      %p183 = scmp.lt.s32.totalorder %s15, 1
      %s184 = scalar_select %p183, %s15, 1
      %s185 = smul.addr %s184, 3
      %s186 = smul.addr %s185, 8
      %s187 = scalar_lea.vmem %s4, %s186
      %p188 = scmp.lt.s32.totalorder %s15, 1
      %s189 = scalar_select %p188, %s15, 1
      %s190 = smul.addr %s189, 3
      %s191 = smul.addr %s190, 8
      %s192 = scalar_lea.vmem %s0, %s191
      %p193 = scmp.lt.s32.totalorder %s15, 1
      %s194 = scalar_select %p193, %s15, 1
      %s195 = smul.addr %s194, 3
      %s196 = smul.addr %s195, 8
      %s197 = scalar_lea.vmem %s4, %s196
      %v198 = vld [vmem:[%s192] sm:$0xff]
      %v199 = vld [vmem:[%s192 + $0x8] sm:$0xff]
      %v200 = vld [vmem:[%s192 + $0x10] sm:$0xff]
      %201 = vrot.lane.b32.xlu0 %v198, 127
      %v202 = vpop.permute.xlu0 %201
      %203 = vrot.lane.b32.xlu0 %v199, 127
      %v204 = vpop.permute.xlu0 %203
      %205 = vrot.lane.b32.xlu0 %v200, 127
      %v206 = vpop.permute.xlu0 %205
      %v207 = vlaneseq
      %v208 = vand.u32 %v207, 127
      %vm209 = vcmp.lt.s32.totalorder %v208, 127
      %v210 = vsel %vm209, %v204, %v206
      %v211 = vsel %vm209, %v202, %v204
      %v212 = vsel %vm209, %v206, %v202
      %213 = vrot.lane.b32.xlu0 %v198, 126
      %v214 = vpop.permute.xlu0 %213
      %215 = vrot.lane.b32.xlu0 %v199, 126
      %v216 = vpop.permute.xlu0 %215
      %217 = vrot.lane.b32.xlu0 %v200, 126
      %v218 = vpop.permute.xlu0 %217
      %vm219 = vcmp.lt.s32.totalorder %v208, 126
      %v220 = vsel %vm219, %v216, %v218
      %v221 = vsel %vm219, %v214, %v216
      %v222 = vsel %vm219, %v218, %v214
      %223 = vrot.lane.b32.xlu0 %v198, 110
      %v224 = vpop.permute.xlu0 %223
      %225 = vrot.lane.b32.xlu0 %v199, 110
      %v226 = vpop.permute.xlu0 %225
      %227 = vrot.lane.b32.xlu0 %v200, 110
      %v228 = vpop.permute.xlu0 %227
      %vm229 = vcmp.lt.s32.totalorder %v208, 110
      %v230 = vsel %vm229, %v226, %v228
      %v231 = vsel %vm229, %v224, %v226
      %v232 = vsel %vm229, %v228, %v224
      %233 = vrot.lane.b32.xlu0 %v198, 109
      %v234 = vpop.permute.xlu0 %233
      %235 = vrot.lane.b32.xlu0 %v199, 109
      %v236 = vpop.permute.xlu0 %235
      %237 = vrot.lane.b32.xlu0 %v200, 109
      %v238 = vpop.permute.xlu0 %237
      %vm239 = vcmp.lt.s32.totalorder %v208, 109
      %v240 = vsel %vm239, %v236, %v238
      %v241 = vsel %vm239, %v234, %v236
      %v242 = vsel %vm239, %v238, %v234
      %243 = vrot.lane.b32.xlu0 %v198, 108
      %v244 = vpop.permute.xlu0 %243
      %245 = vrot.lane.b32.xlu0 %v199, 108
      %v246 = vpop.permute.xlu0 %245
      %247 = vrot.lane.b32.xlu0 %v200, 108
      %v248 = vpop.permute.xlu0 %247
      %vm249 = vcmp.lt.s32.totalorder %v208, 108
      %v250 = vsel %vm249, %v246, %v248
      %v251 = vsel %vm249, %v244, %v246
      %v252 = vsel %vm249, %v248, %v244
      %253 = vrot.lane.b32.xlu0 %v198, 92
      %v254 = vpop.permute.xlu0 %253
      %255 = vrot.lane.b32.xlu0 %v199, 92
      %v256 = vpop.permute.xlu0 %255
      %257 = vrot.lane.b32.xlu0 %v200, 92
      %v258 = vpop.permute.xlu0 %257
      %vm259 = vcmp.lt.s32.totalorder %v208, 92
      %v260 = vsel %vm259, %v256, %v258
      %v261 = vsel %vm259, %v254, %v256
      %v262 = vsel %vm259, %v258, %v254
      %263 = vrot.lane.b32.xlu0 %v198, 91
      %v264 = vpop.permute.xlu0 %263
      %265 = vrot.lane.b32.xlu0 %v199, 91
      %v266 = vpop.permute.xlu0 %265
      %267 = vrot.lane.b32.xlu0 %v200, 91
      %v268 = vpop.permute.xlu0 %267
      %vm269 = vcmp.lt.s32.totalorder %v208, 91
      %v270 = vsel %vm269, %v266, %v268
      %v271 = vsel %vm269, %v264, %v266
      %v272 = vsel %vm269, %v268, %v264
      %273 = vrot.lane.b32.xlu0 %v198, 90
      %v274 = vpop.permute.xlu0 %273
      %275 = vrot.lane.b32.xlu0 %v199, 90
      %v276 = vpop.permute.xlu0 %275
      %277 = vrot.lane.b32.xlu0 %v200, 90
      %v278 = vpop.permute.xlu0 %277
      %vm279 = vcmp.lt.s32.totalorder %v208, 90
      %v280 = vsel %vm279, %v276, %v278
      %v281 = vsel %vm279, %v274, %v276
      %v282 = vsel %vm279, %v278, %v274
      %v283 = vld [vmem:[%s1] sm:$0xff]
      %vm284 = vcmask 588800
      %v286 = vsel %vm284, %v283, 0
      %288 = vmatprep.subr.mxu0 0.0
      %289 = vmatpush1.msra.mxu0 0.0
      %290 = vmatprep.subr.mxu0 0.0
      %291 = vmatpush1.msra.mxu0 0.0
      %292 = vmatprep.subr.mxu0 0.0
      %293 = vmatpush1.msra.mxu0 0.0
      %294 = vmatprep.subr.mxu0 0.0
      %295 = vmatpush1.msra.mxu0 0.0
      %296 = vmatprep.subr.mxu0 0.0
      %297 = vmatpush1.msra.mxu0 0.0
      %298 = vmatprep.subr.mxu0 0.0
      %299 = vmatpush1.msra.mxu0 0.0
      %300 = vmatprep.subr.mxu0 0.0
      %301 = vmatpush1.msra.mxu0 0.0
      %302 = vmatprep.subr.mxu0 %v280
      %303 = vmatpush1.msra.mxu0 %v281
      %304 = vmatprep.subr.mxu0 %v270
      %305 = vmatpush1.msra.mxu0 %v271
      %306 = vmatprep.subr.mxu0 %v260
      %307 = vmatpush1.msra.mxu0 %v261
      %308 = vmatprep.subr.mxu0 %v250
      %309 = vmatpush1.msra.mxu0 %v251
      %310 = vmatprep.subr.mxu0 %v240
      %311 = vmatpush1.msra.mxu0 %v241
      %312 = vmatprep.subr.mxu0 %v230
      %313 = vmatpush1.msra.mxu0 %v231
      %314 = vmatprep.subr.mxu0 %v220
      %315 = vmatpush1.msra.mxu0 %v221
      %316 = vmatprep.subr.mxu0 %v210
      %317 = vmatpush1.msra.mxu0 %v211
      %318 = vmatprep.subr.mxu0 %v199
      %319 = vmatpush1.msra.mxu0 %v198
      %320 = vmatprep.subr.mxu0 0.0
      %321 = vmatpush2.msra.mxu0 0.0
      %322 = vmatprep.subr.mxu0 0.0
      %323 = vmatpush2.msra.mxu0 0.0
      %324 = vmatprep.subr.mxu0 0.0
      %325 = vmatpush2.msra.mxu0 0.0
      %326 = vmatprep.subr.mxu0 0.0
      %327 = vmatpush2.msra.mxu0 0.0
      %328 = vmatprep.subr.mxu0 0.0
      %329 = vmatpush2.msra.mxu0 0.0
      %330 = vmatprep.subr.mxu0 0.0
      %331 = vmatpush2.msra.mxu0 0.0
      %332 = vmatprep.subr.mxu0 0.0
      %333 = vmatpush2.msra.mxu0 0.0
      %334 = vmatprep.subr.mxu0 0.0
      %335 = vmatpush2.msra.mxu0 0.0
      %336 = vmatprep.subr.mxu0 0.0
      %337 = vmatpush2.msra.mxu0 0.0
      %338 = vmatprep.subr.mxu0 0.0
      %339 = vmatpush2.msra.mxu0 0.0
      %340 = vmatprep.subr.mxu0 0.0
      %341 = vmatpush2.msra.mxu0 0.0
      %342 = vmatprep.subr.mxu0 0.0
      %343 = vmatpush2.msra.mxu0 0.0
      %344 = vmatprep.subr.mxu0 0.0
      %345 = vmatpush2.msra.mxu0 0.0
      %346 = vmatprep.subr.mxu0 0.0
      %347 = vmatpush2.msra.mxu0 0.0
      %348 = vmatprep.subr.mxu0 0.0
      %349 = vmatpush2.msra.mxu0 0.0
      %350 = vmatprep.subr.mxu0 0.0
      %351 = vmatpush2.msra.mxu0 0.0
      %352 = vmatprep.mubr.f32.mxu0 0.0
      %353 = vmatmul.mubr.f32.gmra.mxu0 %v286
      %v354 = vpop.f32.mrf.mxu0
      %v355 = vadd.f32 0.0, %v354
      %v356 = vpop.f32.mrf.mxu0
      %v357 = vadd.f32 0.0, %v356
      %358 = vdwg.mxu0
      %359 = vmatprep.subr.mxu0 0.0
      %360 = vmatpush1.msra.mxu0 0.0
      %361 = vmatprep.subr.mxu0 0.0
      %362 = vmatpush1.msra.mxu0 0.0
      %363 = vmatprep.subr.mxu0 0.0
      %364 = vmatpush1.msra.mxu0 0.0
      %365 = vmatprep.subr.mxu0 0.0
      %366 = vmatpush1.msra.mxu0 0.0
      %367 = vmatprep.subr.mxu0 0.0
      %368 = vmatpush1.msra.mxu0 0.0
      %369 = vmatprep.subr.mxu0 0.0
      %370 = vmatpush1.msra.mxu0 0.0
      %371 = vmatprep.subr.mxu0 0.0
      %372 = vmatpush1.msra.mxu0 0.0
      %373 = vmatprep.subr.mxu0 0.0
      %374 = vmatpush1.msra.mxu0 %v282
      %375 = vmatprep.subr.mxu0 0.0
      %376 = vmatpush1.msra.mxu0 %v272
      %377 = vmatprep.subr.mxu0 0.0
      %378 = vmatpush1.msra.mxu0 %v262
      %379 = vmatprep.subr.mxu0 0.0
      %380 = vmatpush1.msra.mxu0 %v252
      %381 = vmatprep.subr.mxu0 0.0
      %382 = vmatpush1.msra.mxu0 %v242
      %383 = vmatprep.subr.mxu0 0.0
      %384 = vmatpush1.msra.mxu0 %v232
      %385 = vmatprep.subr.mxu0 0.0
      %386 = vmatpush1.msra.mxu0 %v222
      %387 = vmatprep.subr.mxu0 0.0
      %388 = vmatpush1.msra.mxu0 %v212
      %389 = vmatprep.subr.mxu0 0.0
      %390 = vmatpush1.msra.mxu0 %v200
      %391 = vmatprep.subr.mxu0 0.0
      %392 = vmatpush2.msra.mxu0 0.0
      %393 = vmatprep.subr.mxu0 0.0
      %394 = vmatpush2.msra.mxu0 0.0
      %395 = vmatprep.subr.mxu0 0.0
      %396 = vmatpush2.msra.mxu0 0.0
      %397 = vmatprep.subr.mxu0 0.0
      %398 = vmatpush2.msra.mxu0 0.0
      %399 = vmatprep.subr.mxu0 0.0
      %400 = vmatpush2.msra.mxu0 0.0
      %401 = vmatprep.subr.mxu0 0.0
      %402 = vmatpush2.msra.mxu0 0.0
      %403 = vmatprep.subr.mxu0 0.0
      %404 = vmatpush2.msra.mxu0 0.0
      %405 = vmatprep.subr.mxu0 0.0
      %406 = vmatpush2.msra.mxu0 0.0
      %407 = vmatprep.subr.mxu0 0.0
      %408 = vmatpush2.msra.mxu0 0.0
      %409 = vmatprep.subr.mxu0 0.0
      %410 = vmatpush2.msra.mxu0 0.0
      %411 = vmatprep.subr.mxu0 0.0
      %412 = vmatpush2.msra.mxu0 0.0
      %413 = vmatprep.subr.mxu0 0.0
      %414 = vmatpush2.msra.mxu0 0.0
      %415 = vmatprep.subr.mxu0 0.0
      %416 = vmatpush2.msra.mxu0 0.0
      %417 = vmatprep.subr.mxu0 0.0
      %418 = vmatpush2.msra.mxu0 0.0
      %419 = vmatprep.subr.mxu0 0.0
      %420 = vmatpush2.msra.mxu0 0.0
      %421 = vmatprep.subr.mxu0 0.0
      %422 = vmatpush2.msra.mxu0 0.0
      %423 = vmatprep.mubr.f32.mxu0 0.0
      %424 = vmatmul.mubr.f32.gmra.mxu0 %v286
      %v425 = vpop.f32.mrf.mxu0
      %v426 = vadd.f32 0.0, %v425
      %v427 = vpop.f32.mrf.mxu0
      %428 = vdwg.mxu0
      %v429 = vld [vmem:[%s2] sm:$0xff]
      %431 = vset.pattern.permute.xlu0 0
      %432 = vperm.xlu0 %431, %v429
      %v433 = vpop.permute.xlu0 %432
      %v435 = vmul.f32 %v355, %v433
      %v436 = vmul.f32 %v357, %v433
      %v437 = vmul.f32 %v426, %v433
      %v438 = vld [vmem:[%s3] sm:$0xff]
      %440 = vset.pattern.permute.xlu0 0
      %441 = vperm.xlu0 %440, %v438
      %v442 = vpop.permute.xlu0 %441
      %v444 = vadd.f32 %v435, %v442
      %v445 = vadd.f32 %v436, %v442
      %v446 = vadd.f32 %v437, %v442
      %v447 = vmax.f32 %v444, 0.0
      %v448 = vmax.f32 %v445, 0.0
      %v449 = vmax.f32 %v446, 0.0
      %450 = vst [vmem:[%s197] sm:$0xff] %v447
      %451 = vst [vmem:[%s197 + $0x8] sm:$0xff] %v448
      %vm452 = vcmask 261120
      %453 = vst.msk [vmem:[%s197 + $0x10] sm:$0xff] %vm452, %v449
      %p454 = scmp.lt.s32.totalorder %s15, 1
      %s455 = scalar_select %p454, %s15, 1
      %s456 = smul.addr %s455, 3
      %s457 = smul.addr %s456, 8
      %s458 = scalar_lea.vmem %s4, %s457
      // Predicated region
      $region37: #{unit_forward.3} parent=35 // pred_check
        %p459 = pneg %p122
      $region38: #{unit_forward.3} parent=35 // pred_check_branch
        %461 = sbr.rel (%p459) target = $region40
      $region39: #{unit_forward.3} parent=35 // pred_region
        _
      $region40: #{unit_forward.3} parent=35 // pred_fallthru
        _
    $region36: #{unit_forward.3} parent=5 // pred_fallthru
      _
    %p462 = scmp.le.s32.totalorder 2, %s10
    // Predicated region
    $region41: #{unit_forward.3} parent=5 // pred_check
      %p463 = pneg %p462
    $region42: #{unit_forward.3} parent=5 // pred_check_branch
      %465 = sbr.rel (%p463) target = $region44
    $region43: #{unit_forward.3} parent=5 // pred_region
      %s466 = ssub.s32 %s10, 2
      // Predicated region
      $region45: #{unit_forward.3} parent=43 // pred_check
        %p467 = pneg %p128
      $region46: #{unit_forward.3} parent=43 // pred_check_branch
        %469 = sbr.rel (%p467) target = $region48
      $region47: #{unit_forward.3} parent=43 // pred_region
        %p470 = scmp.lt.s32.totalorder %s16, 1
        %s471 = scalar_select %p470, %s16, 1
        %s472 = smul.addr %s471, 3
        %s473 = smul.addr %s472, 8
        %s474 = scalar_lea.vmem %s4, %s473
      $region48: #{unit_forward.3} parent=43 // pred_fallthru
        _
    $region44: #{unit_forward.3} parent=5 // pred_fallthru
      _
  $region6: #{unit_forward.3} parent=0 // loop_footer
    %s14 = sadd.s32 1, %s10
  $region7: #{unit_forward.3} parent=0 // loop_footer_branch
    %9 = sbr.rel target = $region3
  $region8: #{unit_forward.3} parent=0 // loop_exit
    _

</llo_original>
